<compile_context>
chip_gen: v7x
topology: tpu7x:2x2x1
jax: 0.10.0
libtpu: 0.0.40
codegen_flags: <defaults>
</compile_context>

<pallas_src>
import functools

import jax
import jax.numpy as jnp
from jax.experimental import pallas as pl
from jax.experimental.pallas import tpu as pltpu

SUBLANE = 8  # f32 sublane width (second-to-last dim of a vreg)


def _round_up(x, m):
    return ((x + m - 1) // m) * m


def ffn_sigmoid_kernel(x_ref, w1_ref, b1_ref, w2_ref, b2_ref, w3_ref, b3_ref,
                       o_ref, *, mxu_dtype):
    x = x_ref[...]
    if mxu_dtype is not None:
        x = x.astype(mxu_dtype)  # cheap VPU cast on a small tile; no wrapper op

    # layer_1 + tanh  (MXU matmul, f32 accumulate; tanh runs on the EUP)
    h1 = jnp.dot(x, w1_ref[...], preferred_element_type=jnp.float32)
    h1 = jnp.tanh(h1 + b1_ref[...])
    if mxu_dtype is not None:
        h1 = h1.astype(mxu_dtype)

    # layer_2 + tanh
    h2 = jnp.dot(h1, w2_ref[...], preferred_element_type=jnp.float32)
    h2 = jnp.tanh(h2 + b2_ref[...])
    if mxu_dtype is not None:
        h2 = h2.astype(mxu_dtype)

    # layer_3 + sigmoid
    h3 = jnp.dot(h2, w3_ref[...], preferred_element_type=jnp.float32)
    o_ref[...] = jax.nn.sigmoid(h3 + b3_ref[...]).astype(o_ref.dtype)


def make_ffn_sigmoid(w1, b1, w2, b2, w3, b3, *, batch_tile=None, mxu_dtype=None):
    """One-time weight prep; returns a jitted forward fn: x (B, in) -> (B, out).

    batch_tile=None  -> single grid step (best for single-TC v5e/v6e).
    batch_tile=k     -> grid of ceil(B/k) steps over the batch (use >=2 steps
                        per TensorCore on dual-TC v7x).
    mxu_dtype=jnp.bfloat16 -> bf16 MXU operands (weights cast once here, x cast
                        in-kernel); accumulation and activations stay f32.
    """
    input_dim, hidden_1 = w1.shape
    hidden_2 = w2.shape[1]
    output_dim = w3.shape[1]

    # --- one-time prep (cached in the closure; NOT re-done per call) ---
    w_dtype = mxu_dtype if mxu_dtype is not None else w1.dtype
    w1c = jnp.asarray(w1, w_dtype)
    w2c = jnp.asarray(w2, w_dtype)
    w3c = jnp.asarray(w3, w_dtype)
    b1c = jnp.asarray(b1, jnp.float32).reshape(1, hidden_1)
    b2c = jnp.asarray(b2, jnp.float32).reshape(1, hidden_2)
    b3c = jnp.asarray(b3, jnp.float32).reshape(1, output_dim)

    kernel = functools.partial(ffn_sigmoid_kernel, mxu_dtype=mxu_dtype)

    def forward(x):
        B = x.shape[0]
        out_dtype = x.dtype

        if batch_tile is None or batch_tile >= B:
            # Single step: every block is the full array extent -> no padding,
            # no (8,128) divisibility requirement, no per-step overhead.
            tb, Bp, n_steps = B, B, 1
            xp = x
        else:
            # Multi-step batch grid (v7x: give both TensorCores work).
            tb = max(SUBLANE, _round_up(min(batch_tile, B), SUBLANE))
            Bp = _round_up(B, tb)
            n_steps = Bp // tb
            xp = x if Bp == B else jnp.zeros((Bp, input_dim), x.dtype).at[:B].set(x)

        # Advisory cost for XLA's scheduler (real, unpadded dims).
        flops = 2 * B * (input_dim * hidden_1 + hidden_1 * hidden_2
                         + hidden_2 * output_dim)
        transcendentals = B * (hidden_1 + hidden_2 + output_dim)
        itemsize = jnp.dtype(x.dtype).itemsize
        w_itemsize = jnp.dtype(w_dtype).itemsize
        bytes_accessed = (
            Bp * input_dim * itemsize
            + (w1c.size + w2c.size + w3c.size) * w_itemsize
            + (b1c.size + b2c.size + b3c.size) * 4
            + Bp * output_dim * jnp.dtype(out_dtype).itemsize)

        # NOTE: resident (constant-index-map) weight blocks are double-buffered
        # by default; at these sizes that is a few hundred KiB and irrelevant.
        # If hidden dims grow into the thousands (esp. on v7x, 64 MiB VMEM),
        # mark the weight specs pipeline_mode=pl.Buffered(1) and/or tile K.
        out = pl.pallas_call(
            kernel,
            out_shape=jax.ShapeDtypeStruct((Bp, output_dim), out_dtype),
            grid_spec=pltpu.PrefetchScalarGridSpec(
                num_scalar_prefetch=0,
                grid=(n_steps,),
                in_specs=[
                    pl.BlockSpec((tb, input_dim), lambda i: (i, 0)),       # x tile
                    pl.BlockSpec((input_dim, hidden_1), lambda i: (0, 0)), # w1
                    pl.BlockSpec((1, hidden_1), lambda i: (0, 0)),         # b1
                    pl.BlockSpec((hidden_1, hidden_2), lambda i: (0, 0)),  # w2
                    pl.BlockSpec((1, hidden_2), lambda i: (0, 0)),         # b2
                    pl.BlockSpec((hidden_2, output_dim), lambda i: (0, 0)),# w3
                    pl.BlockSpec((1, output_dim), lambda i: (0, 0)),       # b3
                ],
                out_specs=pl.BlockSpec((tb, output_dim), lambda i: (i, 0)),
            ),
            # TODO(synk): on v7x verify in the Mosaic dump that "parallel"
            # shards the batch axis across both TensorCores; switch to
            # pltpu.CORE_PARALLEL if it does not.
            compiler_params=pltpu.CompilerParams(
                dimension_semantics=("parallel",)),
            cost_estimate=pl.CostEstimate(
                flops=flops,
                transcendentals=transcendentals,
                bytes_accessed=bytes_accessed),
        )(xp, w1c, b1c, w2c, b2c, w3c, b3c)

        return out if Bp == B else out[:B]

    return jax.jit(forward)


def reference_ffn(x, w1, b1, w2, b2, w3, b3):
    h1 = jnp.tanh(x @ w1 + b1[None, :])
    h2 = jnp.tanh(h1 @ w2 + b2[None, :])
    return jax.nn.sigmoid(h2 @ w3 + b3[None, :])


if __name__ == "__main__":
    # Small shapes consistent with the module spec.
    input_dim, hidden_1, hidden_2, output_dim = 16, 32, 32, 8
    batch = 32

    key = jax.random.PRNGKey(0)
    kx, k1, k2, k3, kb1, kb2, kb3 = jax.random.split(key, 7)

    x = jax.random.normal(kx, (batch, input_dim), dtype=jnp.float32)
    # Mimic nn.Linear's U(-1/sqrt(fan_in), 1/sqrt(fan_in)) init; weights (in, out).
    w1 = jax.random.uniform(k1, (input_dim, hidden_1), jnp.float32,
                            -1.0 / input_dim ** 0.5, 1.0 / input_dim ** 0.5)
    b1 = jax.random.uniform(kb1, (hidden_1,), jnp.float32,
                            -1.0 / input_dim ** 0.5, 1.0 / input_dim ** 0.5)
    w2 = jax.random.uniform(k2, (hidden_1, hidden_2), jnp.float32,
                            -1.0 / hidden_1 ** 0.5, 1.0 / hidden_1 ** 0.5)
    b2 = jax.random.uniform(kb2, (hidden_2,), jnp.float32,
                            -1.0 / hidden_1 ** 0.5, 1.0 / hidden_1 ** 0.5)
    w3 = jax.random.uniform(k3, (hidden_2, output_dim), jnp.float32,
                            -1.0 / hidden_2 ** 0.5, 1.0 / hidden_2 ** 0.5)
    b3 = jax.random.uniform(kb3, (output_dim,), jnp.float32,
                            -1.0 / hidden_2 ** 0.5, 1.0 / hidden_2 ** 0.5)

    ref = reference_ffn(x, w1, b1, w2, b2, w3, b3)

    # Default path: single grid step, f32 MXU (v5e/v6e single-TC friendly).
    fwd = make_ffn_sigmoid(w1, b1, w2, b2, w3, b3)
    out = jax.block_until_ready(fwd(x))
    assert out.shape == (batch, output_dim)
    assert jnp.allclose(out, ref, atol=1e-5, rtol=1e-5), "f32 mismatch vs reference"

    # Multi-step batch grid (v7x-style: 4 steps of 8 rows over the 2 TCs).
    fwd_tiled = make_ffn_sigmoid(w1, b1, w2, b2, w3, b3, batch_tile=8)
    out_tiled = jax.block_until_ready(fwd_tiled(x))
    assert jnp.allclose(out_tiled, ref, atol=1e-5, rtol=1e-5), "tiled mismatch"

    # bf16 MXU-operand path (helps on v5e/v6e/v7x) — looser tolerance.
    fwd_bf16 = make_ffn_sigmoid(w1, b1, w2, b2, w3, b3, mxu_dtype=jnp.bfloat16)
    out_bf16 = jax.block_until_ready(fwd_bf16(x))
    assert jnp.allclose(out_bf16, ref, atol=5e-2, rtol=5e-2), "bf16 mismatch"

    print("KERNEL_OK")
</pallas_src>

<mosaic_0001>
module attributes {stable_mosaic.version = 11 : i64} {
  func.func @ffn_sigmoid_kernel(%arg0: i32, %arg1: memref<32x16xf32, #tpu.memory_space<vmem>>, %arg2: memref<16x32xf32, #tpu.memory_space<vmem>>, %arg3: memref<1x32xf32, #tpu.memory_space<vmem>>, %arg4: memref<32x32xf32, #tpu.memory_space<vmem>>, %arg5: memref<1x32xf32, #tpu.memory_space<vmem>>, %arg6: memref<32x8xf32, #tpu.memory_space<vmem>>, %arg7: memref<1x8xf32, #tpu.memory_space<vmem>>, %arg8: memref<32x8xf32, #tpu.memory_space<vmem>>) attributes {dimension_semantics = [#tpu.dimension_semantics<parallel>], iteration_bounds = array<i64: 1>, scalar_prefetch = 0 : i64, scratch_operands = 0 : i64, tpu.core_type = #tpu.core_type<tc>, window_params = [{transform_indices = @transform_0, window_bounds = array<i64: 32, 16>}, {pipeline_mode = #tpu.pipeline_mode<synchronous>, transform_indices = @transform_1, window_bounds = array<i64: 16, 32>}, {pipeline_mode = #tpu.pipeline_mode<synchronous>, transform_indices = @transform_2, window_bounds = array<i64: 1, 32>}, {pipeline_mode = #tpu.pipeline_mode<synchronous>, transform_indices = @transform_3, window_bounds = array<i64: 32, 32>}, {pipeline_mode = #tpu.pipeline_mode<synchronous>, transform_indices = @transform_4, window_bounds = array<i64: 1, 32>}, {pipeline_mode = #tpu.pipeline_mode<synchronous>, transform_indices = @transform_5, window_bounds = array<i64: 32, 8>}, {pipeline_mode = #tpu.pipeline_mode<synchronous>, transform_indices = @transform_6, window_bounds = array<i64: 1, 8>}, {transform_indices = @transform_7, window_bounds = array<i64: 32, 8>}]} {
    %c0 = arith.constant 0 : index
    %c0_0 = arith.constant 0 : index
    %0 = vector.load %arg1[%c0, %c0_0] : memref<32x16xf32, #tpu.memory_space<vmem>>, vector<32x16xf32>
    %c0_1 = arith.constant 0 : index
    %c0_2 = arith.constant 0 : index
    %1 = vector.load %arg2[%c0_1, %c0_2] : memref<16x32xf32, #tpu.memory_space<vmem>>, vector<16x32xf32>
    %cst = arith.constant dense<0.000000e+00> : vector<32x32xf32>
    %2 = tpu.matmul %0, %1, %cst {dimension_numbers = #tpu.dot_dimension_numbers<[1], [0], [0], [1], [0, 0, 1, 1], [], []>} : vector<32x16xf32>, vector<16x32xf32>, vector<32x32xf32> -> vector<32x32xf32>
    %c0_3 = arith.constant 0 : index
    %c0_4 = arith.constant 0 : index
    %3 = vector.load %arg3[%c0_3, %c0_4] : memref<1x32xf32, #tpu.memory_space<vmem>>, vector<1x32xf32>
    %4 = vector.broadcast %3 : vector<1x32xf32> to vector<32x32xf32>
    %5 = arith.addf %2, %4 : vector<32x32xf32>
    %6 = math.tanh %5 : vector<32x32xf32>
    %c0_5 = arith.constant 0 : index
    %c0_6 = arith.constant 0 : index
    %7 = vector.load %arg4[%c0_5, %c0_6] : memref<32x32xf32, #tpu.memory_space<vmem>>, vector<32x32xf32>
    %cst_7 = arith.constant dense<0.000000e+00> : vector<32x32xf32>
    %8 = tpu.matmul %6, %7, %cst_7 {dimension_numbers = #tpu.dot_dimension_numbers<[1], [0], [0], [1], [0, 0, 1, 1], [], []>} : vector<32x32xf32>, vector<32x32xf32>, vector<32x32xf32> -> vector<32x32xf32>
    %c0_8 = arith.constant 0 : index
    %c0_9 = arith.constant 0 : index
    %9 = vector.load %arg5[%c0_8, %c0_9] : memref<1x32xf32, #tpu.memory_space<vmem>>, vector<1x32xf32>
    %10 = vector.broadcast %9 : vector<1x32xf32> to vector<32x32xf32>
    %11 = arith.addf %8, %10 : vector<32x32xf32>
    %12 = math.tanh %11 : vector<32x32xf32>
    %c0_10 = arith.constant 0 : index
    %c0_11 = arith.constant 0 : index
    %13 = vector.load %arg6[%c0_10, %c0_11] : memref<32x8xf32, #tpu.memory_space<vmem>>, vector<32x8xf32>
    %cst_12 = arith.constant dense<0.000000e+00> : vector<32x8xf32>
    %14 = tpu.matmul %12, %13, %cst_12 {dimension_numbers = #tpu.dot_dimension_numbers<[1], [0], [0], [1], [0, 0, 1, 1], [], []>} : vector<32x32xf32>, vector<32x8xf32>, vector<32x8xf32> -> vector<32x8xf32>
    %c0_13 = arith.constant 0 : index
    %c0_14 = arith.constant 0 : index
    %15 = vector.load %arg7[%c0_13, %c0_14] : memref<1x8xf32, #tpu.memory_space<vmem>>, vector<1x8xf32>
    %16 = vector.broadcast %15 : vector<1x8xf32> to vector<32x8xf32>
    %17 = arith.addf %14, %16 : vector<32x8xf32>
    %18 = arith.negf %17 : vector<32x8xf32>
    %19 = math.exp %18 : vector<32x8xf32>
    %cst_15 = arith.constant 1.000000e+00 : f32
    %20 = vector.broadcast %cst_15 : f32 to vector<32x8xf32>
    %21 = arith.addf %20, %19 : vector<32x8xf32>
    %22 = arith.divf %20, %21 : vector<32x8xf32>
    %c0_16 = arith.constant 0 : index
    %c0_17 = arith.constant 0 : index
    %23 = vector.load %arg8[%c0_16, %c0_17] : memref<32x8xf32, #tpu.memory_space<vmem>>, vector<32x8xf32>
    tpu.vector_store %arg8[%c0_16, %c0_17], %22 {strides = array<i32>} : memref<32x8xf32, #tpu.memory_space<vmem>>, vector<32x8xf32>,
    return
  }
  func.func @transform_0(%arg0: i32) -> (i32, i32) {
    %c0_i32 = arith.constant 0 : i32
    %c0_i32_0 = arith.constant 0 : i32
    return %arg0, %c0_i32 : i32, i32
  }
  func.func @transform_1(%arg0: i32) -> (i32, i32) {
    %c0_i32 = arith.constant 0 : i32
    %c0_i32_0 = arith.constant 0 : i32
    %c0_i32_1 = arith.constant 0 : i32
    return %c0_i32, %c0_i32_0 : i32, i32
  }
  func.func @transform_2(%arg0: i32) -> (i32, i32) {
    %c0_i32 = arith.constant 0 : i32
    %c0_i32_0 = arith.constant 0 : i32
    %c0_i32_1 = arith.constant 0 : i32
    return %c0_i32, %c0_i32_0 : i32, i32
  }
  func.func @transform_3(%arg0: i32) -> (i32, i32) {
    %c0_i32 = arith.constant 0 : i32
    %c0_i32_0 = arith.constant 0 : i32
    %c0_i32_1 = arith.constant 0 : i32
    return %c0_i32, %c0_i32_0 : i32, i32
  }
  func.func @transform_4(%arg0: i32) -> (i32, i32) {
    %c0_i32 = arith.constant 0 : i32
    %c0_i32_0 = arith.constant 0 : i32
    %c0_i32_1 = arith.constant 0 : i32
    return %c0_i32, %c0_i32_0 : i32, i32
  }
  func.func @transform_5(%arg0: i32) -> (i32, i32) {
    %c0_i32 = arith.constant 0 : i32
    %c0_i32_0 = arith.constant 0 : i32
    %c0_i32_1 = arith.constant 0 : i32
    return %c0_i32, %c0_i32_0 : i32, i32
  }
  func.func @transform_6(%arg0: i32) -> (i32, i32) {
    %c0_i32 = arith.constant 0 : i32
    %c0_i32_0 = arith.constant 0 : i32
    %c0_i32_1 = arith.constant 0 : i32
    return %c0_i32, %c0_i32_0 : i32, i32
  }
  func.func @transform_7(%arg0: i32) -> (i32, i32) {
    %c0_i32 = arith.constant 0 : i32
    %c0_i32_0 = arith.constant 0 : i32
    return %arg0, %c0_i32 : i32, i32
  }
}

</mosaic_0001>

<llo_original>
// kernel: forward.1
$region0: #{forward.1}
  #allocation0 [shape = 'u32[]', space=smem, size = 0x4, offset = 0x4, fixed_abs, tag = 'smem constant byte address 0x4 - core index']
  #allocation1 [shape = 'u32[144,128]{1,0:T(1,128)}', space=vmem, size = 0x12000, scoped, tag = 'internal scratch']
  %s0 = inlined_call_operand.vmem [shape: f32[32,16], index: 0, kind: input, shape index: {}]
  %s1 = inlined_call_operand.vmem [shape: f32[16,32], index: 1, kind: input, shape index: {}]
  %s2 = inlined_call_operand.vmem [shape: f32[1,32], index: 2, kind: input, shape index: {}]
  %s3 = inlined_call_operand.hbm [shape: f32[32,32], index: 3, kind: input, shape index: {}]
  %s4 = inlined_call_operand.vmem [shape: f32[1,32], index: 4, kind: input, shape index: {}]
  %s5 = inlined_call_operand.vmem [shape: f32[32,8], index: 5, kind: input, shape index: {}]
  %s6 = inlined_call_operand.vmem [shape: f32[1,8], index: 6, kind: input, shape index: {}]
  %s7 = inlined_call_operand.vmem [shape: f32[32,8], index: 7, kind: output, shape index: {}]
  %s8 = sld [smem:[#allocation0]]
  $region42: #{forward.1} parent=0
    _
  %s10 = ssub.s32 1, %s8
  %s11 = scalar_select 0, %s10, %s8
  $region1: #{forward.1} parent=0
    #allocation2 [shape = 'u8[16384]{0}', space=vmem, size = 0x4000, scoped, tag = 'input window, operand 3, single buffered']
    #allocation3 [shape = 's32[1]{0}', space=sflag, size = 0x4, scoped, tag = 'scoped memory for forward.1']
    %12 = vsyncpa [#allocation3], 0
    // Predicated region
    $region2: #{forward.1} parent=1 // pred_check
      _
    $region3: #{forward.1} parent=1 // pred_check_branch
      %14 = sbr.rel (0) target = $region5
    $region4: #{forward.1} parent=1 // pred_region
      _
    $region5: #{forward.1} parent=1 // pred_fallthru
      _
    // Predicated region
    $region6: #{forward.1} parent=1 // pred_check
      _
    $region7: #{forward.1} parent=1 // pred_check_branch
      %16 = sbr.rel (0) target = $region9
    $region8: #{forward.1} parent=1 // pred_region
      _
    $region9: #{forward.1} parent=1 // pred_fallthru
      _
    // Predicated region
    $region10: #{forward.1} parent=1 // pred_check
      _
    $region11: #{forward.1} parent=1 // pred_check_branch
      %18 = sbr.rel (0) target = $region13
    $region12: #{forward.1} parent=1 // pred_region
      _
    $region13: #{forward.1} parent=1 // pred_fallthru
      _
    // Predicated region
    $region14: #{forward.1} parent=1 // pred_check
      _
    $region15: #{forward.1} parent=1 // pred_check_branch
      %20 = sbr.rel (0) target = $region17
    $region16: #{forward.1} parent=1 // pred_region
      %s22 = ssub.s32 512, 512
      %23 = vsyncadd [#allocation3], %s22
      %s24 = sshll.u32 [#allocation2], 4
      %s25 = int_to_ptr.vmem [resolvable:$true] %s24
      %30 = dma.hbm_to_vmem [thread:$0]  %s3, 512, %s25, [#allocation3], 128, 128, 8
    $region17: #{forward.1} parent=1 // pred_fallthru
      _
    // Predicated region
    $region18: #{forward.1} parent=1 // pred_check
      _
    $region19: #{forward.1} parent=1 // pred_check_branch
      %32 = sbr.rel (0) target = $region21
    $region20: #{forward.1} parent=1 // pred_region
      _
    $region21: #{forward.1} parent=1 // pred_fallthru
      _
    // Predicated region
    $region22: #{forward.1} parent=1 // pred_check
      _
    $region23: #{forward.1} parent=1 // pred_check_branch
      %34 = sbr.rel (0) target = $region25
    $region24: #{forward.1} parent=1 // pred_region
      _
    $region25: #{forward.1} parent=1 // pred_fallthru
      _
    // Predicated region
    $region26: #{forward.1} parent=1 // pred_check
      _
    $region27: #{forward.1} parent=1 // pred_check_branch
      %36 = sbr.rel (0) target = $region29
    $region28: #{forward.1} parent=1 // pred_region
      _
    $region29: #{forward.1} parent=1 // pred_fallthru
      _
    // Predicated region
    $region30: #{forward.1} parent=1 // pred_check
      _
    $region31: #{forward.1} parent=1 // pred_check_branch
      %38 = sbr.rel (0) target = $region33
    $region32: #{forward.1} parent=1 // pred_region
      %39 = dma.done [#allocation3], 512
    $region33: #{forward.1} parent=1 // pred_fallthru
      _
    %v40 = vld [vmem:[%s0] sm:$0xff]
    %v41 = vld [vmem:[%s0 + $0x8] sm:$0xff]
    %v42 = vld [vmem:[%s0 + $0x10] sm:$0xff]
    %v43 = vld [vmem:[%s0 + $0x18] sm:$0xff]
    %v44 = vld [vmem:[%s1] sm:$0xff]
    %v45 = vld [vmem:[%s1 + $0x8] sm:$0xff]
    %v46 = vld [vmem:[%s2] sm:$0x1]
    %v48 = vlaneseq
    %v49 = vshrl.u32 %v48, 7
    %v50 = vsub.s32 0, %v49
    %v51 = vrot.slane %v46, %v50
    %vm53 = vcmask 130048
    %v55 = vsel %vm53, %v40, 0
    %v58 = vsel %vm53, %v41, 0
    %v61 = vsel %vm53, %v42, 0
    %v64 = vsel %vm53, %v43, 0
    %66 = vmatprep.subr.mxu0 0.0
    %67 = vmatpush1.msra.mxu0 %v44
    %68 = vmatprep.subr.mxu0 0.0
    %69 = vmatpush1.msra.mxu0 %v45
    %70 = vmatprep.subr.mxu0 0.0
    %71 = vmatpush1.msra.mxu0 0.0
    %72 = vmatprep.subr.mxu0 0.0
    %73 = vmatpush1.msra.mxu0 0.0
    %74 = vmatprep.subr.mxu0 0.0
    %75 = vmatpush1.msra.mxu0 0.0
    %76 = vmatprep.subr.mxu0 0.0
    %77 = vmatpush1.msra.mxu0 0.0
    %78 = vmatprep.subr.mxu0 0.0
    %79 = vmatpush1.msra.mxu0 0.0
    %80 = vmatprep.subr.mxu0 0.0
    %81 = vmatpush1.msra.mxu0 0.0
    %82 = vmatprep.subr.mxu0 0.0
    %83 = vmatpush1.msra.mxu0 0.0
    %84 = vmatprep.subr.mxu0 0.0
    %85 = vmatpush1.msra.mxu0 0.0
    %86 = vmatprep.subr.mxu0 0.0
    %87 = vmatpush1.msra.mxu0 0.0
    %88 = vmatprep.subr.mxu0 0.0
    %89 = vmatpush1.msra.mxu0 0.0
    %90 = vmatprep.subr.mxu0 0.0
    %91 = vmatpush1.msra.mxu0 0.0
    %92 = vmatprep.subr.mxu0 0.0
    %93 = vmatpush1.msra.mxu0 0.0
    %94 = vmatprep.subr.mxu0 0.0
    %95 = vmatpush1.msra.mxu0 0.0
    %96 = vmatprep.subr.mxu0 0.0
    %97 = vmatpush1.msra.mxu0 0.0
    %98 = vmatprep.subr.mxu0 0.0
    %99 = vmatpush1.msra.mxu0 0.0
    %100 = vmatprep.subr.mxu0 0.0
    %101 = vmatpush1.msra.mxu0 0.0
    %102 = vmatprep.subr.mxu0 0.0
    %103 = vmatpush1.msra.mxu0 0.0
    %104 = vmatprep.subr.mxu0 0.0
    %105 = vmatpush1.msra.mxu0 0.0
    %106 = vmatprep.subr.mxu0 0.0
    %107 = vmatpush1.msra.mxu0 0.0
    %108 = vmatprep.subr.mxu0 0.0
    %109 = vmatpush1.msra.mxu0 0.0
    %110 = vmatprep.subr.mxu0 0.0
    %111 = vmatpush1.msra.mxu0 0.0
    %112 = vmatprep.subr.mxu0 0.0
    %113 = vmatpush1.msra.mxu0 0.0
    %114 = vmatprep.subr.mxu0 0.0
    %115 = vmatpush1.msra.mxu0 0.0
    %116 = vmatprep.subr.mxu0 0.0
    %117 = vmatpush1.msra.mxu0 0.0
    %118 = vmatprep.subr.mxu0 0.0
    %119 = vmatpush1.msra.mxu0 0.0
    %120 = vmatprep.subr.mxu0 0.0
    %121 = vmatpush1.msra.mxu0 0.0
    %122 = vmatprep.subr.mxu0 0.0
    %123 = vmatpush1.msra.mxu0 0.0
    %124 = vmatprep.subr.mxu0 0.0
    %125 = vmatpush1.msra.mxu0 0.0
    %126 = vmatprep.subr.mxu0 0.0
    %127 = vmatpush1.msra.mxu0 0.0
    %128 = vmatprep.subr.mxu0 0.0
    %129 = vmatpush1.msra.mxu0 0.0
    %130 = vmatprep.mubr.f32.mxu0 0.0
    %131 = vmatmul.mubr.f32.gmra.mrb[0].mxu0 %v55
    %v132 = vpop.f32.mrb[0].mxu0
    %v133 = vadd.f32 %v51, %v132
    %v134 = vpop.f32.mrb[0].mxu0
    %135 = vmatprep.mubr.f32.mxu0 0.0
    %136 = vmatmul.mubr.f32.gmra.mrb[0].mxu0 %v58
    %v137 = vpop.f32.mrb[0].mxu0
    %v138 = vadd.f32 %v51, %v137
    %v139 = vpop.f32.mrb[0].mxu0
    %140 = vmatprep.mubr.f32.mxu0 0.0
    %141 = vmatmul.mubr.f32.gmra.mrb[0].mxu0 %v61
    %v142 = vpop.f32.mrb[0].mxu0
    %v143 = vadd.f32 %v51, %v142
    %v144 = vpop.f32.mrb[0].mxu0
    %145 = vmatprep.mubr.f32.mxu0 0.0
    %146 = vmatmul.mubr.f32.gmra.mrb[0].mxu0 %v64
    %v147 = vpop.f32.mrb[0].mxu0
    %v148 = vadd.f32 %v51, %v147
    %v149 = vpop.f32.mrb[0].mxu0
    %150 = vdwg.mxu0
    %v151 = vtanh.pop %v133
    %v152 = vtanh.pop %v138
    %v153 = vtanh.pop %v143
    %v154 = vtanh.pop %v148
    %v155 = vld [vmem:[#allocation2] sm:$0xff]
    %v156 = vld [vmem:[#allocation2 + $0x8] sm:$0xff]
    %v157 = vld [vmem:[#allocation2 + $0x10] sm:$0xff]
    %v158 = vld [vmem:[#allocation2 + $0x18] sm:$0xff]
    %v159 = vld [vmem:[%s4] sm:$0x1]
    %v161 = vlaneseq
    %v162 = vshrl.u32 %v161, 7
    %v163 = vsub.s32 0, %v162
    %v164 = vrot.slane %v159, %v163
    %vm166 = vcmask 261120
    %v168 = vsel %vm166, %v151, 0
    %v171 = vsel %vm166, %v152, 0
    %v174 = vsel %vm166, %v153, 0
    %v177 = vsel %vm166, %v154, 0
    %179 = vmatprep.subr.mxu0 0.0
    %180 = vmatpush1.msra.mxu0 %v155
    %181 = vmatprep.subr.mxu0 0.0
    %182 = vmatpush1.msra.mxu0 %v156
    %183 = vmatprep.subr.mxu0 0.0
    %184 = vmatpush1.msra.mxu0 %v157
    %185 = vmatprep.subr.mxu0 0.0
    %186 = vmatpush1.msra.mxu0 %v158
    %187 = vmatprep.subr.mxu0 0.0
    %188 = vmatpush1.msra.mxu0 0.0
    %189 = vmatprep.subr.mxu0 0.0
    %190 = vmatpush1.msra.mxu0 0.0
    %191 = vmatprep.subr.mxu0 0.0
    %192 = vmatpush1.msra.mxu0 0.0
    %193 = vmatprep.subr.mxu0 0.0
    %194 = vmatpush1.msra.mxu0 0.0
    %195 = vmatprep.subr.mxu0 0.0
    %196 = vmatpush1.msra.mxu0 0.0
    %197 = vmatprep.subr.mxu0 0.0
    %198 = vmatpush1.msra.mxu0 0.0
    %199 = vmatprep.subr.mxu0 0.0
    %200 = vmatpush1.msra.mxu0 0.0
    %201 = vmatprep.subr.mxu0 0.0
    %202 = vmatpush1.msra.mxu0 0.0
    %203 = vmatprep.subr.mxu0 0.0
    %204 = vmatpush1.msra.mxu0 0.0
    %205 = vmatprep.subr.mxu0 0.0
    %206 = vmatpush1.msra.mxu0 0.0
    %207 = vmatprep.subr.mxu0 0.0
    %208 = vmatpush1.msra.mxu0 0.0
    %209 = vmatprep.subr.mxu0 0.0
    %210 = vmatpush1.msra.mxu0 0.0
    %211 = vmatprep.subr.mxu0 0.0
    %212 = vmatpush1.msra.mxu0 0.0
    %213 = vmatprep.subr.mxu0 0.0
    %214 = vmatpush1.msra.mxu0 0.0
    %215 = vmatprep.subr.mxu0 0.0
    %216 = vmatpush1.msra.mxu0 0.0
    %217 = vmatprep.subr.mxu0 0.0
    %218 = vmatpush1.msra.mxu0 0.0
    %219 = vmatprep.subr.mxu0 0.0
    %220 = vmatpush1.msra.mxu0 0.0
    %221 = vmatprep.subr.mxu0 0.0
    %222 = vmatpush1.msra.mxu0 0.0
    %223 = vmatprep.subr.mxu0 0.0
    %224 = vmatpush1.msra.mxu0 0.0
    %225 = vmatprep.subr.mxu0 0.0
    %226 = vmatpush1.msra.mxu0 0.0
    %227 = vmatprep.subr.mxu0 0.0
    %228 = vmatpush1.msra.mxu0 0.0
    %229 = vmatprep.subr.mxu0 0.0
    %230 = vmatpush1.msra.mxu0 0.0
    %231 = vmatprep.subr.mxu0 0.0
    %232 = vmatpush1.msra.mxu0 0.0
    %233 = vmatprep.subr.mxu0 0.0
    %234 = vmatpush1.msra.mxu0 0.0
    %235 = vmatprep.subr.mxu0 0.0
    %236 = vmatpush1.msra.mxu0 0.0
    %237 = vmatprep.subr.mxu0 0.0
    %238 = vmatpush1.msra.mxu0 0.0
    %239 = vmatprep.subr.mxu0 0.0
    %240 = vmatpush1.msra.mxu0 0.0
    %241 = vmatprep.subr.mxu0 0.0
    %242 = vmatpush1.msra.mxu0 0.0
    %243 = vmatprep.mubr.f32.mxu0 0.0
    %244 = vmatmul.mubr.f32.gmra.mrb[0].mxu0 %v168
    %v245 = vpop.f32.mrb[0].mxu0
    %v246 = vadd.f32 %v164, %v245
    %v247 = vpop.f32.mrb[0].mxu0
    %248 = vmatprep.mubr.f32.mxu0 0.0
    %249 = vmatmul.mubr.f32.gmra.mrb[0].mxu0 %v171
    %v250 = vpop.f32.mrb[0].mxu0
    %v251 = vadd.f32 %v164, %v250
    %v252 = vpop.f32.mrb[0].mxu0
    %253 = vmatprep.mubr.f32.mxu0 0.0
    %254 = vmatmul.mubr.f32.gmra.mrb[0].mxu0 %v174
    %v255 = vpop.f32.mrb[0].mxu0
    %v256 = vadd.f32 %v164, %v255
    %v257 = vpop.f32.mrb[0].mxu0
    %258 = vmatprep.mubr.f32.mxu0 0.0
    %259 = vmatmul.mubr.f32.gmra.mrb[0].mxu0 %v177
    %v260 = vpop.f32.mrb[0].mxu0
    %v261 = vadd.f32 %v164, %v260
    %v262 = vpop.f32.mrb[0].mxu0
    %263 = vdwg.mxu0
    %v264 = vtanh.pop %v246
    %v265 = vtanh.pop %v251
    %v266 = vtanh.pop %v256
    %v267 = vtanh.pop %v261
    %v268 = vld [vmem:[%s5] sm:$0xff]
    %v269 = vld [vmem:[%s5 + $0x8] sm:$0xff]
    %v270 = vld [vmem:[%s5 + $0x10] sm:$0xff]
    %v271 = vld [vmem:[%s5 + $0x18] sm:$0xff]
    %v272 = vld [vmem:[%s6] sm:$0x1]
    %v274 = vlaneseq
    %v275 = vshrl.u32 %v274, 7
    %v276 = vsub.s32 0, %v275
    %v277 = vrot.slane %v272, %v276
    %v280 = vsel %vm166, %v264, 0
    %v283 = vsel %vm166, %v265, 0
    %v286 = vsel %vm166, %v266, 0
    %v289 = vsel %vm166, %v267, 0
    %291 = vmatprep.subr.mxu0 0.0
    %292 = vmatpush1.msra.mxu0 %v268
    %293 = vmatprep.subr.mxu0 0.0
    %294 = vmatpush1.msra.mxu0 %v269
    %295 = vmatprep.subr.mxu0 0.0
    %296 = vmatpush1.msra.mxu0 %v270
    %297 = vmatprep.subr.mxu0 0.0
    %298 = vmatpush1.msra.mxu0 %v271
    %299 = vmatprep.subr.mxu0 0.0
    %300 = vmatpush1.msra.mxu0 0.0
    %301 = vmatprep.subr.mxu0 0.0
    %302 = vmatpush1.msra.mxu0 0.0
    %303 = vmatprep.subr.mxu0 0.0
    %304 = vmatpush1.msra.mxu0 0.0
    %305 = vmatprep.subr.mxu0 0.0
    %306 = vmatpush1.msra.mxu0 0.0
    %307 = vmatprep.subr.mxu0 0.0
    %308 = vmatpush1.msra.mxu0 0.0
    %309 = vmatprep.subr.mxu0 0.0
    %310 = vmatpush1.msra.mxu0 0.0
    %311 = vmatprep.subr.mxu0 0.0
    %312 = vmatpush1.msra.mxu0 0.0
    %313 = vmatprep.subr.mxu0 0.0
    %314 = vmatpush1.msra.mxu0 0.0
    %315 = vmatprep.subr.mxu0 0.0
    %316 = vmatpush1.msra.mxu0 0.0
    %317 = vmatprep.subr.mxu0 0.0
    %318 = vmatpush1.msra.mxu0 0.0
    %319 = vmatprep.subr.mxu0 0.0
    %320 = vmatpush1.msra.mxu0 0.0
    %321 = vmatprep.subr.mxu0 0.0
    %322 = vmatpush1.msra.mxu0 0.0
    %323 = vmatprep.subr.mxu0 0.0
    %324 = vmatpush1.msra.mxu0 0.0
    %325 = vmatprep.subr.mxu0 0.0
    %326 = vmatpush1.msra.mxu0 0.0
    %327 = vmatprep.subr.mxu0 0.0
    %328 = vmatpush1.msra.mxu0 0.0
    %329 = vmatprep.subr.mxu0 0.0
    %330 = vmatpush1.msra.mxu0 0.0
    %331 = vmatprep.subr.mxu0 0.0
    %332 = vmatpush1.msra.mxu0 0.0
    %333 = vmatprep.subr.mxu0 0.0
    %334 = vmatpush1.msra.mxu0 0.0
    %335 = vmatprep.subr.mxu0 0.0
    %336 = vmatpush1.msra.mxu0 0.0
    %337 = vmatprep.subr.mxu0 0.0
    %338 = vmatpush1.msra.mxu0 0.0
    %339 = vmatprep.subr.mxu0 0.0
    %340 = vmatpush1.msra.mxu0 0.0
    %341 = vmatprep.subr.mxu0 0.0
    %342 = vmatpush1.msra.mxu0 0.0
    %343 = vmatprep.subr.mxu0 0.0
    %344 = vmatpush1.msra.mxu0 0.0
    %345 = vmatprep.subr.mxu0 0.0
    %346 = vmatpush1.msra.mxu0 0.0
    %347 = vmatprep.subr.mxu0 0.0
    %348 = vmatpush1.msra.mxu0 0.0
    %349 = vmatprep.subr.mxu0 0.0
    %350 = vmatpush1.msra.mxu0 0.0
    %351 = vmatprep.subr.mxu0 0.0
    %352 = vmatpush1.msra.mxu0 0.0
    %353 = vmatprep.subr.mxu0 0.0
    %354 = vmatpush1.msra.mxu0 0.0
    %355 = vmatprep.mubr.f32.mxu0 0.0
    %356 = vmatmul.mubr.f32.gmra.mrb[0].mxu0 %v280
    %v357 = vpop.f32.mrb[0].mxu0
    %v358 = vadd.f32 %v277, %v357
    %v359 = vpop.f32.mrb[0].mxu0
    %360 = vmatprep.mubr.f32.mxu0 0.0
    %361 = vmatmul.mubr.f32.gmra.mrb[0].mxu0 %v283
    %v362 = vpop.f32.mrb[0].mxu0
    %v363 = vadd.f32 %v277, %v362
    %v364 = vpop.f32.mrb[0].mxu0
    %365 = vmatprep.mubr.f32.mxu0 0.0
    %366 = vmatmul.mubr.f32.gmra.mrb[0].mxu0 %v286
    %v367 = vpop.f32.mrb[0].mxu0
    %v368 = vadd.f32 %v277, %v367
    %v369 = vpop.f32.mrb[0].mxu0
    %370 = vmatprep.mubr.f32.mxu0 0.0
    %371 = vmatmul.mubr.f32.gmra.mrb[0].mxu0 %v289
    %v372 = vpop.f32.mrb[0].mxu0
    %v373 = vadd.f32 %v277, %v372
    %v374 = vpop.f32.mrb[0].mxu0
    %375 = vdwg.mxu0
    %v376 = vxor.u32 %v358, 2147483648
    %v377 = vxor.u32 %v363, 2147483648
    %v378 = vxor.u32 %v368, 2147483648
    %v379 = vxor.u32 %v373, 2147483648
    %v380 = vmul.f32 %v376, 1.442695
    %v381 = vpow.pop %v380
    %v382 = vmul.f32 %v377, 1.442695
    %v383 = vpow.pop %v382
    %v384 = vmul.f32 %v378, 1.442695
    %v385 = vpow.pop %v384
    %v386 = vmul.f32 %v379, 1.442695
    %v387 = vpow.pop %v386
    %v388 = vadd.f32 %v381, 1.0
    %v389 = vadd.f32 %v383, 1.0
    %v390 = vadd.f32 %v385, 1.0
    %v391 = vadd.f32 %v387, 1.0
    %v392 = vrcp.pop %v388
    %v393 = vmul.f32 1.0, %v392
    %v394 = vrcp.pop %v389
    %v395 = vmul.f32 1.0, %v394
    %v396 = vrcp.pop %v390
    %v397 = vmul.f32 1.0, %v396
    %v398 = vrcp.pop %v391
    %v399 = vmul.f32 1.0, %v398
    %vm400 = vcmask 64512
    %401 = vst.msk [vmem:[%s7] sm:$0xff] %vm400, %v393
    %402 = vst.msk [vmem:[%s7 + $0x8] sm:$0xff] %vm400, %v395
    %403 = vst.msk [vmem:[%s7 + $0x10] sm:$0xff] %vm400, %v397
    %404 = vst.msk [vmem:[%s7 + $0x18] sm:$0xff] %vm400, %v399
    // Predicated region
    $region34: #{forward.1} parent=1 // pred_check
      _
    $region35: #{forward.1} parent=1 // pred_check_branch
      %406 = sbr.rel (0) target = $region37
    $region36: #{forward.1} parent=1 // pred_region
      _
    $region37: #{forward.1} parent=1 // pred_fallthru
      _
    // Predicated region
    $region38: #{forward.1} parent=1 // pred_check
      _
    $region39: #{forward.1} parent=1 // pred_check_branch
      %408 = sbr.rel (0) target = $region41
    $region40: #{forward.1} parent=1 // pred_region
      _
    $region41: #{forward.1} parent=1 // pred_fallthru
      _
    %409 = vsyncpa [#allocation3], 1

</llo_original>
